<compile_context>
chip_gen: v6e
topology: v6e:2x2x1
jax: 0.10.0
libtpu: 0.0.40
codegen_flags: <defaults>
</compile_context>

<pallas_src>
import numpy as np
import jax
import jax.numpy as jnp
from jax.experimental import pallas as pl
from jax.experimental.pallas import tpu as pltpu


def _make_lovasz_kernel(sub_p):
    """Build the kernel closed over the static sub-chunk width."""

    def kernel(gts_ref, loss_ref, tgt_ref, out_ref,
               tri_ref, cum_carry, jac_carry, acc_ref):
        """One TILE_P-wide block of the per-class Lovasz scan.

        gts_ref : (C, 1)       f32  total positives per class (whole image)
        loss_ref: (C, TILE_P)  f32  sorted |target - input| tile (pixels on lanes)
        tgt_ref : (C, TILE_P)  bf16 co-sorted one-hot target tile
        out_ref : (C, 1)       f32  per-class losses (written on the last step)
        tri_ref : (sub_p, sub_p) bf16 scratch, upper-triangular ones (built once)
        cum_carry / jac_carry / acc_ref : (C, 1) f32 scratch scan carries
        """
        i = pl.program_id(0)
        C, T = loss_ref.shape
        n_sub = T // sub_p

        @pl.when(i == 0)
        def _():
            cum_carry[...] = jnp.zeros_like(cum_carry)
            jac_carry[...] = jnp.zeros_like(jac_carry)
            acc_ref[...] = jnp.zeros_like(acc_ref)
            # tri[k, j] = 1 iff k <= j  ->  dot(tgt, tri) is an inclusive lane
            # cumsum on the MXU (bf16 {0,1} inputs, f32 accumulation: exact).
            row = jax.lax.broadcasted_iota(jnp.int32, (sub_p, sub_p), 0)
            col = jax.lax.broadcasted_iota(jnp.int32, (sub_p, sub_p), 1)
            tri_ref[...] = (row <= col).astype(jnp.bfloat16)

        gts = gts_ref[...]                                   # (C, 1) f32
        tri = tri_ref[...]                                   # (sub_p, sub_p) bf16

        # Hoisted lane constants (invariant across the sub-chunk loop).
        lane = jax.lax.broadcasted_iota(jnp.int32, (C, sub_p), 1)
        lane_pos = lane.astype(jnp.float32) + 1.0            # 1-based local pos
        is_lane0 = lane == 0

        # Register-carried scan state across sub-chunks.
        cum = cum_carry[...]                                 # running cumsum(tgt)
        jac_prev = jac_carry[...]                            # previous lane's jaccard
        acc = acc_ref[...]                                   # per-class dot accumulator

        base0 = (i * T).astype(jnp.float32)

        # Fully unrolled (n_sub is static, tiny (C, sub_p) tiles -> negligible
        # vreg pressure); equivalent to lax.fori_loop(..., unroll=True).
        for s in range(n_sub):
            loss = loss_ref[:, s * sub_p:(s + 1) * sub_p]    # (C, sub_p) f32
            tgt_bf = tgt_ref[:, s * sub_p:(s + 1) * sub_p]   # (C, sub_p) bf16

            # Sub-chunk inclusive cumsum along lanes + carried running total.
            local_cum = jnp.dot(tgt_bf, tri,
                                preferred_element_type=jnp.float32)
            cum_t = local_cum + cum                          # (C, sub_p)

            # Global 1-based position; cumsum(1 - tgt) = pos - cumsum(tgt).
            pos = lane_pos + (base0 + float(s * sub_p))
            cum_not_t = pos - cum_t

            intersection = gts - cum_t
            union = gts + cum_not_t                          # >= 1 everywhere
            jaccard = 1.0 - intersection / union             # (C, sub_p)

            # lovasz_grad finite difference along lanes; the previous lane's
            # value crosses the sub-chunk boundary via jac_prev.
            rolled = pltpu.roll(jaccard, shift=1, axis=1)    # rolled[:, j] = jac[:, j-1]
            prev = jnp.where(is_lane0, jac_prev, rolled)
            grad = jaccard - prev

            acc = acc + jnp.sum(loss * grad, axis=1, keepdims=True)
            cum = cum_t[:, sub_p - 1:sub_p]                  # new running total (free)
            jac_prev = jaccard[:, sub_p - 1:sub_p]

        cum_carry[...] = cum
        jac_carry[...] = jac_prev
        acc_ref[...] = acc

        @pl.when(i == pl.num_programs(0) - 1)
        def _():
            out_ref[...] = acc

    return kernel


def lovasz_softmax(inputs, targets, *, tile_p=4096, sub_p=256):
    """inputs: (N, C, H, W) float scores; targets: (N, H, W) int. Scalar loss."""
    assert sub_p % 128 == 0, "sub_p must be a multiple of 128 (TPU lane width)"
    assert tile_p % sub_p == 0, "tile_p must be a multiple of sub_p"
    N, C, H, W = inputs.shape

    # Lane-dense (C, P) layout built BEFORE the sort; pixel p flattens (n, h, w)
    # row-major, matching inputs.permute(0, 2, 3, 1).view(-1, C) in the module.
    x = jnp.transpose(inputs, (1, 0, 2, 3)).reshape(C, -1).astype(jnp.float32)  # (C, P)
    t = targets.reshape(-1).astype(jnp.int32)                                   # (P,)

    classes = jnp.arange(C, dtype=jnp.int32)
    tgt = (classes[:, None] == t[None, :]).astype(jnp.float32)                  # (C, P)
    loss = jnp.abs(tgt - x)                                                     # (C, P)

    # TODO(synk): the per-class descending sort has no Pallas TPU lowering; it
    # is done as a single fused key/value sort in XLA (stable, descending via
    # negated key; tie order differs from torch.sort(descending=True) but the
    # Lovasz dot is invariant to permutations among equal errors).
    neg_sorted, tgt_sorted = jax.lax.sort((-loss, tgt), dimension=1,
                                          is_stable=True, num_keys=1)
    loss_sorted = -neg_sorted                                                   # (C, P)

    gts = jnp.sum(tgt, axis=1, keepdims=True)                                   # (C, 1)

    # Pad the pixel axis with zero loss / zero target (padded pixels contribute
    # exactly 0 to every per-class dot and to every cumulative count).
    P = loss_sorted.shape[1]
    num_tiles = pl.cdiv(P, tile_p)
    pad = num_tiles * tile_p - P
    loss_p = jnp.pad(loss_sorted, ((0, 0), (0, pad)))                           # (C, Pp) f32
    tgt_p = jnp.pad(tgt_sorted, ((0, 0), (0, pad))).astype(jnp.bfloat16)        # (C, Pp) bf16

    per_class = pl.pallas_call(
        _make_lovasz_kernel(sub_p),
        out_shape=jax.ShapeDtypeStruct((C, 1), jnp.float32),
        grid_spec=pltpu.PrefetchScalarGridSpec(
            num_scalar_prefetch=0,
            grid=(num_tiles,),
            in_specs=[
                pl.BlockSpec((C, 1), lambda i: (0, 0)),        # gts (resident, tiny)
                pl.BlockSpec((C, tile_p), lambda i: (0, i)),   # sorted loss tile
                pl.BlockSpec((C, tile_p), lambda i: (0, i)),   # sorted target tile
            ],
            out_specs=pl.BlockSpec((C, 1), lambda i: (0, 0)),
            scratch_shapes=[
                pltpu.VMEM((sub_p, sub_p), jnp.bfloat16),  # in-kernel tri constant
                pltpu.VMEM((C, 1), jnp.float32),           # running cumsum(tgt) carry
                pltpu.VMEM((C, 1), jnp.float32),           # previous lane's jaccard
                pltpu.VMEM((C, 1), jnp.float32),           # per-class dot accumulator
            ],
        ),
        compiler_params=pltpu.CompilerParams(
            # Carried scan over the pixel axis -> must stay sequential.
            # (A leading size-2 "parallel" axis over class halves could feed
            # v7x's 2nd TensorCore, but only pays once per-step compute binds.)
            dimension_semantics=("arbitrary",),
            # Actual VMEM use is ~6*tile_p*C bytes (double-buffered) + the
            # sub_p^2 bf16 tri: well under 1 MiB; 32 MiB limit is safe on
            # v5e/v6e (128 MiB) and v7x (64 MiB).
            vmem_limit_bytes=32 << 20,
        ),
    )(gts, loss_p, tgt_p)

    return jnp.mean(per_class)


# ---------------- pure numpy reference (mirrors the PyTorch module) ----------------
def _lovasz_grad_ref(gt_sorted):
    p = len(gt_sorted)
    gts = gt_sorted.sum()
    intersection = gts - np.cumsum(gt_sorted)
    union = gts + np.cumsum(1.0 - gt_sorted)
    jaccard = 1.0 - intersection / union
    if p > 1:
        jaccard[1:p] = jaccard[1:p] - jaccard[0:-1]
    return jaccard


def _lovasz_softmax_ref(inputs, targets):
    N, C, H, W = inputs.shape
    x = np.transpose(inputs, (0, 2, 3, 1)).reshape(-1, C).astype(np.float64)
    t = targets.reshape(-1).astype(np.float64)
    losses = []
    for c in range(C):
        target_c = (t == c).astype(np.float64)
        input_c = x[:, c]
        loss_c = np.abs(target_c - input_c)
        idx = np.argsort(-loss_c, kind="stable")
        loss_c_sorted = loss_c[idx]
        target_c_sorted = target_c[idx]
        losses.append(np.dot(loss_c_sorted, _lovasz_grad_ref(target_c_sorted)))
    return np.mean(np.stack(losses))


if __name__ == "__main__":
    key = jax.random.PRNGKey(0)
    k1, k2 = jax.random.split(key)

    N, C, H, W = 2, 4, 16, 16
    inputs = jax.random.uniform(k1, (N, C, H, W), dtype=jnp.float32)  # raw scores (module applies no softmax)
    targets = jax.random.randint(k2, (N, H, W), 0, C, dtype=jnp.int32)

    # P = N*H*W = 512 pixels. tile_p=256 / sub_p=128 exercises BOTH carry
    # levels at this small size (2 grid steps x 2 in-kernel sub-chunks);
    # production sizes should use the defaults (tile_p=4096, sub_p=256).
    fn = jax.jit(lambda a, b: lovasz_softmax(a, b, tile_p=256, sub_p=128))
    out = jax.block_until_ready(fn(inputs, targets))

    ref = _lovasz_softmax_ref(np.asarray(inputs), np.asarray(targets))
    assert np.allclose(np.asarray(out), ref, rtol=1e-4, atol=1e-4), (out, ref)

    print("KERNEL_OK")
</pallas_src>

<mosaic_0001>
module attributes {stable_mosaic.version = 11 : i64} {
  func.func @kernel(%arg0: i32, %arg1: memref<4x1xf32, #tpu.memory_space<vmem>>, %arg2: memref<4x256xf32, #tpu.memory_space<vmem>>, %arg3: memref<4x256xbf16, #tpu.memory_space<vmem>>, %arg4: memref<4x1xf32, #tpu.memory_space<vmem>>, %arg5: memref<128x128xbf16, #tpu.memory_space<vmem>>, %arg6: memref<4x1xf32, #tpu.memory_space<vmem>>, %arg7: memref<4x1xf32, #tpu.memory_space<vmem>>, %arg8: memref<4x1xf32, #tpu.memory_space<vmem>>) attributes {dimension_semantics = [#tpu.dimension_semantics<arbitrary>], iteration_bounds = array<i64: 2>, scalar_prefetch = 0 : i64, scratch_operands = 4 : i64, tpu.core_type = #tpu.core_type<tc>, window_params = [{pipeline_mode = #tpu.pipeline_mode<synchronous>, transform_indices = @transform_0, window_bounds = array<i64: 4, 1>}, {transform_indices = @transform_1, window_bounds = array<i64: 4, 256>}, {transform_indices = @transform_2, window_bounds = array<i64: 4, 256>}, {pipeline_mode = #tpu.pipeline_mode<synchronous>, transform_indices = @transform_3, window_bounds = array<i64: 4, 1>}]} {
    %c0_i32 = arith.constant 0 : i32
    %0 = arith.cmpi eq, %arg0, %c0_i32 : i32
    %1 = arith.extui %0 : i1 to i32
    %c0_i32_0 = arith.constant 0 : i32
    %2 = arith.cmpi ne, %1, %c0_i32_0 : i32
    scf.if %2 {
      %cst_35 = arith.constant 0.000000e+00 : f32
      %76 = vector.broadcast %cst_35 : f32 to vector<4x1xf32>
      %c0_36 = arith.constant 0 : index
      %c0_37 = arith.constant 0 : index
      %77 = vector.load %arg6[%c0_36, %c0_37] : memref<4x1xf32, #tpu.memory_space<vmem>>, vector<4x1xf32>
      tpu.vector_store %arg6[%c0_36, %c0_37], %76 {strides = array<i32>} : memref<4x1xf32, #tpu.memory_space<vmem>>, vector<4x1xf32>,
      %cst_38 = arith.constant 0.000000e+00 : f32
      %78 = vector.broadcast %cst_38 : f32 to vector<4x1xf32>
      %c0_39 = arith.constant 0 : index
      %c0_40 = arith.constant 0 : index
      %79 = vector.load %arg7[%c0_39, %c0_40] : memref<4x1xf32, #tpu.memory_space<vmem>>, vector<4x1xf32>
      tpu.vector_store %arg7[%c0_39, %c0_40], %78 {strides = array<i32>} : memref<4x1xf32, #tpu.memory_space<vmem>>, vector<4x1xf32>,
      %cst_41 = arith.constant 0.000000e+00 : f32
      %80 = vector.broadcast %cst_41 : f32 to vector<4x1xf32>
      %c0_42 = arith.constant 0 : index
      %c0_43 = arith.constant 0 : index
      %81 = vector.load %arg8[%c0_42, %c0_43] : memref<4x1xf32, #tpu.memory_space<vmem>>, vector<4x1xf32>
      tpu.vector_store %arg8[%c0_42, %c0_43], %80 {strides = array<i32>} : memref<4x1xf32, #tpu.memory_space<vmem>>, vector<4x1xf32>,
      %82 = tpu.iota {dimensions = array<i32: 0>} : vector<128x128xi32>
      %83 = tpu.iota {dimensions = array<i32: 1>} : vector<128x128xi32>
      %84 = arith.cmpi sle, %82, %83 : vector<128x128xi32>
      %85 = arith.extui %84 : vector<128x128xi1> to vector<128x128xi32>
      %86 = arith.sitofp %85 : vector<128x128xi32> to vector<128x128xf32>
      %87 = arith.truncf %86 : vector<128x128xf32> to vector<128x128xbf16>
      %c0_44 = arith.constant 0 : index
      %c0_45 = arith.constant 0 : index
      %88 = vector.load %arg5[%c0_44, %c0_45] : memref<128x128xbf16, #tpu.memory_space<vmem>>, vector<128x128xbf16>
      tpu.vector_store %arg5[%c0_44, %c0_45], %87 {strides = array<i32>} : memref<128x128xbf16, #tpu.memory_space<vmem>>, vector<128x128xbf16>,
    } else {
    }
    %c0 = arith.constant 0 : index
    %c0_1 = arith.constant 0 : index
    %3 = vector.load %arg1[%c0, %c0_1] : memref<4x1xf32, #tpu.memory_space<vmem>>, vector<4x1xf32>
    %c0_2 = arith.constant 0 : index
    %c0_3 = arith.constant 0 : index
    %4 = vector.load %arg5[%c0_2, %c0_3] : memref<128x128xbf16, #tpu.memory_space<vmem>>, vector<128x128xbf16>
    %5 = tpu.iota {dimensions = array<i32: 1>} : vector<4x128xi32>
    %6 = arith.sitofp %5 : vector<4x128xi32> to vector<4x128xf32>
    %cst = arith.constant 1.000000e+00 : f32
    %7 = vector.broadcast %cst : f32 to vector<4x128xf32>
    %8 = arith.addf %6, %7 : vector<4x128xf32>
    %c0_i32_4 = arith.constant 0 : i32
    %9 = vector.broadcast %c0_i32_4 : i32 to vector<4x128xi32>
    %10 = arith.cmpi eq, %5, %9 : vector<4x128xi32>
    %c0_5 = arith.constant 0 : index
    %c0_6 = arith.constant 0 : index
    %11 = vector.load %arg6[%c0_5, %c0_6] : memref<4x1xf32, #tpu.memory_space<vmem>>, vector<4x1xf32>
    %c0_7 = arith.constant 0 : index
    %c0_8 = arith.constant 0 : index
    %12 = vector.load %arg7[%c0_7, %c0_8] : memref<4x1xf32, #tpu.memory_space<vmem>>, vector<4x1xf32>
    %c0_9 = arith.constant 0 : index
    %c0_10 = arith.constant 0 : index
    %13 = vector.load %arg8[%c0_9, %c0_10] : memref<4x1xf32, #tpu.memory_space<vmem>>, vector<4x1xf32>
    %c256_i32 = arith.constant 256 : i32
    %14 = arith.muli %arg0, %c256_i32 : i32
    %15 = arith.sitofp %14 : i32 to f32
    %c0_11 = arith.constant 0 : index
    %c0_12 = arith.constant 0 : index
    %16 = vector.load %arg2[%c0_11, %c0_12] : memref<4x256xf32, #tpu.memory_space<vmem>>, vector<4x128xf32>
    %c0_13 = arith.constant 0 : index
    %c0_14 = arith.constant 0 : index
    %17 = vector.load %arg3[%c0_13, %c0_14] : memref<4x256xbf16, #tpu.memory_space<vmem>>, vector<4x128xbf16>
    %cst_15 = arith.constant dense<0.000000e+00> : vector<4x128xf32>
    %18 = tpu.matmul %17, %4, %cst_15 {dimension_numbers = #tpu.dot_dimension_numbers<[1], [0], [0], [1], [0, 0, 1, 1], [], []>} : vector<4x128xbf16>, vector<128x128xbf16>, vector<4x128xf32> -> vector<4x128xf32>
    %19 = vector.broadcast %11 : vector<4x1xf32> to vector<4x128xf32>
    %20 = arith.addf %18, %19 : vector<4x128xf32>
    %cst_16 = arith.constant 0.000000e+00 : f32
    %21 = arith.addf %15, %cst_16 : f32
    %22 = vector.broadcast %21 : f32 to vector<4x128xf32>
    %23 = arith.addf %8, %22 : vector<4x128xf32>
    %24 = arith.subf %23, %20 : vector<4x128xf32>
    %25 = vector.broadcast %3 : vector<4x1xf32> to vector<4x128xf32>
    %26 = arith.subf %25, %20 : vector<4x128xf32>
    %27 = vector.broadcast %3 : vector<4x1xf32> to vector<4x128xf32>
    %28 = arith.addf %27, %24 : vector<4x128xf32>
    %29 = arith.divf %26, %28 : vector<4x128xf32>
    %cst_17 = arith.constant 1.000000e+00 : f32
    %30 = vector.broadcast %cst_17 : f32 to vector<4x128xf32>
    %31 = arith.subf %30, %29 : vector<4x128xf32>
    %c1_i32 = arith.constant 1 : i32
    %32 = tpu.dynamic_rotate %31 by %c1_i32 dim 1 : vector<4x128xf32>, i32 -> vector<4x128xf32>
    %33 = vector.shape_cast %12 : vector<4x1xf32> to vector<4x1xf32>
    %34 = vector.broadcast %33 : vector<4x1xf32> to vector<4x128xf32>
    %35 = arith.select %10, %34, %32 : vector<4x128xi1>, vector<4x128xf32>
    %36 = arith.subf %31, %35 : vector<4x128xf32>
    %37 = arith.mulf %16, %36 : vector<4x128xf32>
    %cst_18 = arith.constant dense<0.000000e+00> : vector<4xf32>
    %38 = vector.multi_reduction <add>, %37, %cst_18 [1] : vector<4x128xf32> to vector<4xf32>
    %39 = vector.shape_cast %38 : vector<4xf32> to vector<4x1xf32>
    %40 = arith.addf %13, %39 : vector<4x1xf32>
    %41 = vector.extract_strided_slice %20 {offsets = [0, 127], sizes = [4, 1], strides = [1, 1]} : vector<4x128xf32> to vector<4x1xf32>
    %42 = vector.extract_strided_slice %31 {offsets = [0, 127], sizes = [4, 1], strides = [1, 1]} : vector<4x128xf32> to vector<4x1xf32>
    %c0_19 = arith.constant 0 : index
    %c128 = arith.constant 128 : index
    %43 = vector.load %arg2[%c0_19, %c128] : memref<4x256xf32, #tpu.memory_space<vmem>>, vector<4x128xf32>
    %c0_20 = arith.constant 0 : index
    %c128_21 = arith.constant 128 : index
    %44 = vector.load %arg3[%c0_20, %c128_21] : memref<4x256xbf16, #tpu.memory_space<vmem>>, vector<4x128xbf16>
    %cst_22 = arith.constant dense<0.000000e+00> : vector<4x128xf32>
    %45 = tpu.matmul %44, %4, %cst_22 {dimension_numbers = #tpu.dot_dimension_numbers<[1], [0], [0], [1], [0, 0, 1, 1], [], []>} : vector<4x128xbf16>, vector<128x128xbf16>, vector<4x128xf32> -> vector<4x128xf32>
    %46 = vector.broadcast %41 : vector<4x1xf32> to vector<4x128xf32>
    %47 = arith.addf %45, %46 : vector<4x128xf32>
    %cst_23 = arith.constant 1.280000e+02 : f32
    %48 = arith.addf %15, %cst_23 : f32
    %49 = vector.broadcast %48 : f32 to vector<4x128xf32>
    %50 = arith.addf %8, %49 : vector<4x128xf32>
    %51 = arith.subf %50, %47 : vector<4x128xf32>
    %52 = vector.broadcast %3 : vector<4x1xf32> to vector<4x128xf32>
    %53 = arith.subf %52, %47 : vector<4x128xf32>
    %54 = vector.broadcast %3 : vector<4x1xf32> to vector<4x128xf32>
    %55 = arith.addf %54, %51 : vector<4x128xf32>
    %56 = arith.divf %53, %55 : vector<4x128xf32>
    %cst_24 = arith.constant 1.000000e+00 : f32
    %57 = vector.broadcast %cst_24 : f32 to vector<4x128xf32>
    %58 = arith.subf %57, %56 : vector<4x128xf32>
    %c1_i32_25 = arith.constant 1 : i32
    %59 = tpu.dynamic_rotate %58 by %c1_i32_25 dim 1 : vector<4x128xf32>, i32 -> vector<4x128xf32>
    %60 = vector.shape_cast %42 : vector<4x1xf32> to vector<4x1xf32>
    %61 = vector.broadcast %60 : vector<4x1xf32> to vector<4x128xf32>
    %62 = arith.select %10, %61, %59 : vector<4x128xi1>, vector<4x128xf32>
    %63 = arith.subf %58, %62 : vector<4x128xf32>
    %64 = arith.mulf %43, %63 : vector<4x128xf32>
    %cst_26 = arith.constant dense<0.000000e+00> : vector<4xf32>
    %65 = vector.multi_reduction <add>, %64, %cst_26 [1] : vector<4x128xf32> to vector<4xf32>
    %66 = vector.shape_cast %65 : vector<4xf32> to vector<4x1xf32>
    %67 = arith.addf %40, %66 : vector<4x1xf32>
    %68 = vector.extract_strided_slice %47 {offsets = [0, 127], sizes = [4, 1], strides = [1, 1]} : vector<4x128xf32> to vector<4x1xf32>
    %69 = vector.extract_strided_slice %58 {offsets = [0, 127], sizes = [4, 1], strides = [1, 1]} : vector<4x128xf32> to vector<4x1xf32>
    %c0_27 = arith.constant 0 : index
    %c0_28 = arith.constant 0 : index
    %70 = vector.load %arg6[%c0_27, %c0_28] : memref<4x1xf32, #tpu.memory_space<vmem>>, vector<4x1xf32>
    tpu.vector_store %arg6[%c0_27, %c0_28], %68 {strides = array<i32>} : memref<4x1xf32, #tpu.memory_space<vmem>>, vector<4x1xf32>,
    %c0_29 = arith.constant 0 : index
    %c0_30 = arith.constant 0 : index
    %71 = vector.load %arg7[%c0_29, %c0_30] : memref<4x1xf32, #tpu.memory_space<vmem>>, vector<4x1xf32>
    tpu.vector_store %arg7[%c0_29, %c0_30], %69 {strides = array<i32>} : memref<4x1xf32, #tpu.memory_space<vmem>>, vector<4x1xf32>,
    %c0_31 = arith.constant 0 : index
    %c0_32 = arith.constant 0 : index
    %72 = vector.load %arg8[%c0_31, %c0_32] : memref<4x1xf32, #tpu.memory_space<vmem>>, vector<4x1xf32>
    tpu.vector_store %arg8[%c0_31, %c0_32], %67 {strides = array<i32>} : memref<4x1xf32, #tpu.memory_space<vmem>>, vector<4x1xf32>,
    %c1_i32_33 = arith.constant 1 : i32
    %73 = arith.cmpi eq, %arg0, %c1_i32_33 : i32
    %74 = arith.extui %73 : i1 to i32
    %c0_i32_34 = arith.constant 0 : i32
    %75 = arith.cmpi ne, %74, %c0_i32_34 : i32
    scf.if %75 {
      %c0_35 = arith.constant 0 : index
      %c0_36 = arith.constant 0 : index
      %76 = vector.load %arg4[%c0_35, %c0_36] : memref<4x1xf32, #tpu.memory_space<vmem>>, vector<4x1xf32>
      tpu.vector_store %arg4[%c0_35, %c0_36], %67 {strides = array<i32>} : memref<4x1xf32, #tpu.memory_space<vmem>>, vector<4x1xf32>,
    } else {
    }
    return
  }
  func.func @transform_0(%arg0: i32) -> (i32, i32) {
    %c0_i32 = arith.constant 0 : i32
    %c0_i32_0 = arith.constant 0 : i32
    %c0_i32_1 = arith.constant 0 : i32
    return %c0_i32, %c0_i32_0 : i32, i32
  }
  func.func @transform_1(%arg0: i32) -> (i32, i32) {
    %c0_i32 = arith.constant 0 : i32
    %c0_i32_0 = arith.constant 0 : i32
    return %c0_i32, %arg0 : i32, i32
  }
  func.func @transform_2(%arg0: i32) -> (i32, i32) {
    %c0_i32 = arith.constant 0 : i32
    %c0_i32_0 = arith.constant 0 : i32
    return %c0_i32, %arg0 : i32, i32
  }
  func.func @transform_3(%arg0: i32) -> (i32, i32) {
    %c0_i32 = arith.constant 0 : i32
    %c0_i32_0 = arith.constant 0 : i32
    %c0_i32_1 = arith.constant 0 : i32
    return %c0_i32, %c0_i32_0 : i32, i32
  }
}

</mosaic_0001>

<llo_original>
// kernel: eq.15
$region0: #{eq.15}
  %s0 = inlined_call_operand.vmem [shape: s32[2,16,16], index: 0, kind: input, shape index: {}]
  %s1 = inlined_call_operand.vmem [shape: s32[512], index: 1, kind: output, shape index: {}]
  $region1: #{eq.15} parent=0
    #allocation0 [shape = 'u8[4096]{0}', space=vmem, size = 0x1000, scoped, tag = 'scoped mem for output reshape']
    %v2 = vld [vmem:[%s0] ss:$8 sm:$0xf]
    %vm3 = vcmask 130048
    %4 = vst.msk [vmem:[#allocation0] sm:$0xf] %vm3, %v2
    %s5 = scalar_lea.vmem %s0, 7
    %v6 = vld [vmem:[%s5] ss:$8 sm:$0xf]
    %7 = vrot.lane.b32.xlu0 %v6, 112
    %v8 = vpop.permute.xlu0 %7
    %vm9 = vcmask 1048448
    %10 = vst.msk [vmem:[#allocation0] sm:$0xf] %vm9, %v8
    %s11 = scalar_lea.vmem %s0, 6
    %v12 = vld [vmem:[%s11] ss:$8 sm:$0xf]
    %13 = vrot.lane.b32.xlu0 %v12, 96
    %v14 = vpop.permute.xlu0 %13
    %vm15 = vcmask 917248
    %16 = vst.msk [vmem:[#allocation0] sm:$0xf] %vm15, %v14
    %s17 = scalar_lea.vmem %s0, 5
    %v18 = vld [vmem:[%s17] ss:$8 sm:$0xf]
    %19 = vrot.lane.b32.xlu0 %v18, 80
    %v20 = vpop.permute.xlu0 %19
    %vm21 = vcmask 786048
    %22 = vst.msk [vmem:[#allocation0] sm:$0xf] %vm21, %v20
    %s23 = scalar_lea.vmem %s0, 4
    %v24 = vld [vmem:[%s23] ss:$8 sm:$0xf]
    %25 = vrot.lane.b32.xlu0 %v24, 64
    %v26 = vpop.permute.xlu0 %25
    %vm27 = vcmask 654848
    %28 = vst.msk [vmem:[#allocation0] sm:$0xf] %vm27, %v26
    %s29 = scalar_lea.vmem %s0, 3
    %v30 = vld [vmem:[%s29] ss:$8 sm:$0xf]
    %31 = vrot.lane.b32.xlu0 %v30, 48
    %v32 = vpop.permute.xlu0 %31
    %vm33 = vcmask 523648
    %34 = vst.msk [vmem:[#allocation0] sm:$0xf] %vm33, %v32
    %s35 = scalar_lea.vmem %s0, 2
    %v36 = vld [vmem:[%s35] ss:$8 sm:$0xf]
    %37 = vrot.lane.b32.xlu0 %v36, 32
    %v38 = vpop.permute.xlu0 %37
    %vm39 = vcmask 392448
    %40 = vst.msk [vmem:[#allocation0] sm:$0xf] %vm39, %v38
    %s41 = scalar_lea.vmem %s0, 1
    %v42 = vld [vmem:[%s41] ss:$8 sm:$0xf]
    %43 = vrot.lane.b32.xlu0 %v42, 16
    %v44 = vpop.permute.xlu0 %43
    %vm45 = vcmask 261248
    %46 = vst.msk [vmem:[#allocation0] sm:$0xf] %vm45, %v44
    %s48 = sshll.u32 1, 4
    %s49 = ssub.s32 %s48, 1
    %v51 = vld [vmem:[#allocation0] sm:%s49]
    %s52 = sshll.u32 1, 4
    %s53 = ssub.s32 %s52, 1
    %54 = vst [vmem:[%s1] sm:%s53] %v51

// kernel: neg.3
$region0: #{neg.3}
  #allocation0 [shape = 's32[1]{0}', space=sflag, size = 0x4, scoped, tag = 'scoped memory for neg.3']
  %s0 = inlined_call_operand.vmem [shape: f32[4,512], index: 0, kind: input, shape index: {}]
  %s1 = inlined_call_operand.vmem [shape: f32[4,512], index: 1, kind: output, shape index: {}]
  %v2 = vld [vmem:[%s0] sm:$0xf]
  %3 = xla_tuple %v2
  %4 = xla_tuple %3
  %v5 = vxor.u32 %v2, 2147483648
  %6 = xla_tuple %v5
  %7 = vst [vmem:[%s1] sm:$0xf] %v5
  %s8 = scalar_lea.vmem %s0, 4
  %v9 = vld [vmem:[%s8] sm:$0xf]
  %10 = xla_tuple %v9
  %11 = xla_tuple %10
  %v12 = vxor.u32 %v9, 2147483648
  %13 = xla_tuple %v12
  %s14 = scalar_lea.vmem %s1, 4
  %15 = vst [vmem:[%s14] sm:$0xf] %v12
  %s16 = scalar_lea.vmem %s0, 8
  %v17 = vld [vmem:[%s16] sm:$0xf]
  %18 = xla_tuple %v17
  %19 = xla_tuple %18
  %v20 = vxor.u32 %v17, 2147483648
  %21 = xla_tuple %v20
  %s22 = scalar_lea.vmem %s1, 8
  %23 = vst [vmem:[%s22] sm:$0xf] %v20
  %s24 = scalar_lea.vmem %s0, 12
  %v25 = vld [vmem:[%s24] sm:$0xf]
  %26 = xla_tuple %v25
  %27 = xla_tuple %26
  %v28 = vxor.u32 %v25, 2147483648
  %29 = xla_tuple %v28
  %s30 = scalar_lea.vmem %s1, 12
  %31 = vst [vmem:[%s30] sm:$0xf] %v28

// kernel: _lambda_.1
$region0: #{_lambda_.1}
  #allocation0 [shape = 'u32[]', space=smem, size = 0x4, offset = 0x4, fixed_abs, tag = 'smem constant byte address 0x4 - core index']
  #allocation1 [shape = 'u32[144,128]{1,0:T(1,128)}', space=vmem, size = 0x12000, scoped, tag = 'internal scratch']
  #allocation2 [shape = 'bf16[128,128]{1,0:T(8,128)(2,1)}', space=vmem, size = 0x8000, scoped, tag = 'scratch operand']
  #allocation3 [shape = 'f32[4,1]{1,0:T(4,128)}', space=vmem, size = 0x800, scoped, tag = 'scratch operand']
  #allocation4 [shape = 'f32[4,1]{1,0:T(4,128)}', space=vmem, size = 0x800, scoped, tag = 'scratch operand']
  #allocation5 [shape = 'f32[4,1]{1,0:T(4,128)}', space=vmem, size = 0x800, scoped, tag = 'scratch operand']
  %s0 = inlined_call_operand.vmem [shape: f32[4,1], index: 0, kind: input, shape index: {}]
  %s1 = inlined_call_operand.vmem [shape: f32[4,512], index: 1, kind: input, shape index: {}]
  %s2 = inlined_call_operand.vmem [shape: bf16[4,512], index: 2, kind: input, shape index: {}]
  %s3 = inlined_call_operand.vmem [shape: f32[4,1], index: 3, kind: output, shape index: {}]
  %s4 = sld [smem:[#allocation0]]
  $region53: #{_lambda_.1} parent=0
    _
  %s6 = ssub.s32 1, %s4
  %s7 = scalar_select 0, %s6, %s4
  loop: start=0, step=1, limit=4
  $region2: #{_lambda_.1} parent=0 // loop_pre_header
    _
  $region3: #{_lambda_.1} parent=0 // loop_header
    %s9 = sphi 0, %s13
    %p10 = scmp.ge.s32.totalorder %s9, 4
    %s17 = sphi 0, %s17
    %s19 = sphi 0, %s17
    %s20 = sphi 0, %s19
    %s34 = sphi 0, %s20
    %s40 = sphi 0, %s42
    %s43 = sphi 0, %s40
    %s44 = sphi 0, %s43
    %s60 = sphi 0, %s44
    %s66 = sphi 0, %s68
    %s69 = sphi 0, %s66
    %s70 = sphi 0, %s69
    %s86 = sphi 0, %s70
    %s90 = sphi 0, %s90
    %s92 = sphi 0, %s90
    %s93 = sphi 0, %s92
    %s107 = sphi 0, %s93
  $region4: #{_lambda_.1} parent=0 // loop_header_branch
    %12 = sbr.rel (%p10) target = $region8
  $region5: #{_lambda_.1} parent=0 // loop_body
    %s14 = ssub.s32 %s9, 1
    %s15 = ssub.s32 %s9, 2
    %s16 = sadd.s32 %s9, 1
    %s18 = sadd.s32 %s17, 1
    %p21 = scmp.eq.s32.totalorder %s9, 1
    %p22 = scmp.ne.s32.totalorder %s17, %s19
    %p23 = scmp.eq.s32.totalorder %s9, 0
    %p24 = por %p22, %p23
    %p25 = scmp.ne.s32.totalorder %s17, %s19
    %p26 = scmp.eq.s32.totalorder %s14, 1
    %p27 = por %p25, %p26
    %p28 = scmp.ne.s32.totalorder %s19, %s20
    %p29 = scmp.eq.s32.totalorder %s14, 0
    %p30 = por %p28, %p29
    %p31 = scmp.ne.s32.totalorder %s19, %s20
    %p32 = scmp.eq.s32.totalorder %s15, 1
    %p33 = por %p31, %p32
    %p35 = scmp.ne.s32.totalorder %s20, %s34
    %p36 = scmp.eq.s32.totalorder %s15, 0
    %p37 = por %p35, %p36
    %s38 = ssub.s32 %s9, %s16
    %p39 = scmp.eq.s32.totalorder %s38, 0
    %s41 = sadd.s32 %s40, 1
    %s42 = scalar_select %p39, %s40, %s41
    %p45 = pneg %p39
    %p46 = scmp.eq.s32.totalorder %s9, 1
    %p47 = por %p45, %p46
    %p48 = scmp.ne.s32.totalorder %s40, %s43
    %p49 = scmp.eq.s32.totalorder %s9, 0
    %p50 = por %p48, %p49
    %p51 = scmp.ne.s32.totalorder %s40, %s43
    %p52 = scmp.eq.s32.totalorder %s14, 1
    %p53 = por %p51, %p52
    %p54 = scmp.ne.s32.totalorder %s43, %s44
    %p55 = scmp.eq.s32.totalorder %s14, 0
    %p56 = por %p54, %p55
    %p57 = scmp.ne.s32.totalorder %s43, %s44
    %p58 = scmp.eq.s32.totalorder %s15, 1
    %p59 = por %p57, %p58
    %p61 = scmp.ne.s32.totalorder %s44, %s60
    %p62 = scmp.eq.s32.totalorder %s15, 0
    %p63 = por %p61, %p62
    %s64 = ssub.s32 %s9, %s16
    %p65 = scmp.eq.s32.totalorder %s64, 0
    %s67 = sadd.s32 %s66, 1
    %s68 = scalar_select %p65, %s66, %s67
    %p71 = pneg %p65
    %p72 = scmp.eq.s32.totalorder %s9, 1
    %p73 = por %p71, %p72
    %p74 = scmp.ne.s32.totalorder %s66, %s69
    %p75 = scmp.eq.s32.totalorder %s9, 0
    %p76 = por %p74, %p75
    %p77 = scmp.ne.s32.totalorder %s66, %s69
    %p78 = scmp.eq.s32.totalorder %s14, 1
    %p79 = por %p77, %p78
    %p80 = scmp.ne.s32.totalorder %s69, %s70
    %p81 = scmp.eq.s32.totalorder %s14, 0
    %p82 = por %p80, %p81
    %p83 = scmp.ne.s32.totalorder %s69, %s70
    %p84 = scmp.eq.s32.totalorder %s15, 1
    %p85 = por %p83, %p84
    %p87 = scmp.ne.s32.totalorder %s70, %s86
    %p88 = scmp.eq.s32.totalorder %s15, 0
    %p89 = por %p87, %p88
    %s91 = sadd.s32 %s90, 1
    %p94 = scmp.eq.s32.totalorder %s9, 1
    %p95 = scmp.ne.s32.totalorder %s90, %s92
    %p96 = scmp.eq.s32.totalorder %s9, 0
    %p97 = por %p95, %p96
    %p98 = scmp.ne.s32.totalorder %s90, %s92
    %p99 = scmp.eq.s32.totalorder %s14, 1
    %p100 = por %p98, %p99
    %p101 = scmp.ne.s32.totalorder %s92, %s93
    %p102 = scmp.eq.s32.totalorder %s14, 0
    %p103 = por %p101, %p102
    %p104 = scmp.ne.s32.totalorder %s92, %s93
    %p105 = scmp.eq.s32.totalorder %s15, 1
    %p106 = por %p104, %p105
    %p108 = scmp.ne.s32.totalorder %s93, %s107
    %p109 = scmp.eq.s32.totalorder %s15, 0
    %p110 = por %p108, %p109
    %p111 = scmp.le.s32.totalorder 1, %s9
    %p112 = scmp.lt.s32.totalorder %s9, 3
    %p113 = pnand %p111, %p112
    %p114 = pneg %p113
    // Predicated region
    $region9: #{_lambda_.1} parent=5 // pred_check
      _
    $region10: #{_lambda_.1} parent=5 // pred_check_branch
      %116 = sbr.rel (%p113) target = $region12
    $region11: #{_lambda_.1} parent=5 // pred_region
      %s117 = ssub.s32 %s9, 1
      // Predicated region
      $region13: #{_lambda_.1} parent=11 // pred_check
        %p118 = pneg %p30
      $region14: #{_lambda_.1} parent=11 // pred_check_branch
        %120 = sbr.rel (%p118) target = $region16
      $region15: #{_lambda_.1} parent=11 // pred_region
        _
      $region16: #{_lambda_.1} parent=11 // pred_fallthru
        _
    $region12: #{_lambda_.1} parent=5 // pred_fallthru
      _
    %p121 = scmp.lt.s32.totalorder %s9, 2
    // Predicated region
    $region17: #{_lambda_.1} parent=5 // pred_check
      %p122 = pneg %p121
    $region18: #{_lambda_.1} parent=5 // pred_check_branch
      %124 = sbr.rel (%p122) target = $region20
    $region19: #{_lambda_.1} parent=5 // pred_region
      // Predicated region
      $region21: #{_lambda_.1} parent=19 // pred_check
        %p125 = pneg %p50
      $region22: #{_lambda_.1} parent=19 // pred_check_branch
        %127 = sbr.rel (%p125) target = $region24
      $region23: #{_lambda_.1} parent=19 // pred_region
        %s128 = smul.u32 2, %s9
        %p129 = scmp.lt.s32.totalorder %s128, 3
        %s130 = scalar_select %p129, %s128, 3
        %s131 = smul.addr %s130, 4
        %s132 = scalar_lea.vmem %s1, %s131
        %s133 = smul.u32 2, %s9
      $region24: #{_lambda_.1} parent=19 // pred_fallthru
        _
      // Predicated region
      $region25: #{_lambda_.1} parent=19 // pred_check
        %p134 = pneg %p76
      $region26: #{_lambda_.1} parent=19 // pred_check_branch
        %136 = sbr.rel (%p134) target = $region28
      $region27: #{_lambda_.1} parent=19 // pred_region
        %s137 = smul.u32 2, %s9
        %p138 = scmp.lt.s32.totalorder %s137, 3
        %s139 = scalar_select %p138, %s137, 3
        %s140 = smul.addr %s139, 2
        %s141 = scalar_lea.vmem %s2, %s140
        %s142 = smul.u32 2, %s9
      $region28: #{_lambda_.1} parent=19 // pred_fallthru
        _
    $region20: #{_lambda_.1} parent=5 // pred_fallthru
      _
    %p143 = scmp.le.s32.totalorder 1, %s9
    %p144 = scmp.lt.s32.totalorder %s9, 3
    %p145 = pnand %p143, %p144
    %p146 = pneg %p145
    // Predicated region
    $region29: #{_lambda_.1} parent=5 // pred_check
      _
    $region30: #{_lambda_.1} parent=5 // pred_check_branch
      %148 = sbr.rel (%p145) target = $region32
    $region31: #{_lambda_.1} parent=5 // pred_region
      %s149 = ssub.s32 %s9, 1
      %p150 = pneg %p30
      %p151 = pneg %p27
      %s152 = smul.u32 2, %s14
      %p153 = scmp.lt.s32.totalorder %s152, 3
      %s154 = scalar_select %p153, %s152, 3
      %s155 = smul.addr %s154, 4
      %s156 = scalar_lea.vmem %s1, %s155
      %p157 = pneg %p56
      %p158 = pneg %p53
      %s159 = smul.u32 2, %s14
      %p160 = scmp.lt.s32.totalorder %s159, 3
      %s161 = scalar_select %p160, %s159, 3
      %s162 = smul.addr %s161, 2
      %s163 = scalar_lea.vmem %s2, %s162
      %p164 = pneg %p82
      %p165 = pneg %p79
      %p166 = pneg %p103
      %p167 = pneg %p100
      %s168 = smul.u32 2, %s14
      %p169 = scmp.lt.s32.totalorder %s168, 3
      %s170 = scalar_select %p169, %s168, 3
      %s171 = smul.addr %s170, 4
      %s172 = scalar_lea.vmem %s1, %s171
      %s173 = smul.u32 2, %s14
      %s174 = smul.u32 2, %s14
      %p175 = scmp.lt.s32.totalorder %s174, 3
      %s176 = scalar_select %p175, %s174, 3
      %s177 = smul.addr %s176, 2
      %s178 = scalar_lea.vmem %s2, %s177
      %s179 = smul.u32 2, %s14
      %p181 = scmp.eq.s32.totalorder %s14, 0
      // Predicated region
      $region33: #{_lambda_.1} parent=31 // pred_check
        %p182 = pneg %p181
      $region34: #{_lambda_.1} parent=31 // pred_check_branch
        %184 = sbr.rel (%p182) target = $region36
      $region35: #{_lambda_.1} parent=31 // pred_region
        %vm185 = vcmask 3072
        %186 = vst.msk [vmem:[#allocation3] sm:$0xf] %vm185, 0.0
        %187 = vst.msk [vmem:[#allocation4] sm:$0xf] %vm185, 0.0
        %188 = vst.msk [vmem:[#allocation5] sm:$0xf] %vm185, 0.0
        %v189 = vlaneseq
        %v190 = vshrl.u32 %v189, 7
        %v191 = vadd.s32 %v190, 8
        %v192 = vadd.s32 %v190, 16
        %v193 = vadd.s32 %v190, 24
        %v194 = vadd.s32 %v190, 32
        %v195 = vadd.s32 %v190, 40
        %v196 = vadd.s32 %v190, 48
        %v197 = vadd.s32 %v190, 56
        %v198 = vadd.s32 %v190, 64
        %v199 = vadd.s32 %v190, 72
        %v200 = vadd.s32 %v190, 80
        %v201 = vadd.s32 %v190, 88
        %v202 = vadd.s32 %v190, 96
        %v203 = vadd.s32 %v190, 104
        %v204 = vadd.s32 %v190, 112
        %v205 = vadd.s32 %v190, 120
        %v206 = vlaneseq
        %v207 = vand.u32 %v206, 127
        %vm208 = vcmp.le.s32.totalorder %v190, %v207
        %vm209 = vcmp.le.s32.totalorder %v191, %v207
        %vm210 = vcmp.le.s32.totalorder %v192, %v207
        %vm211 = vcmp.le.s32.totalorder %v193, %v207
        %vm212 = vcmp.le.s32.totalorder %v194, %v207
        %vm213 = vcmp.le.s32.totalorder %v195, %v207
        %vm214 = vcmp.le.s32.totalorder %v196, %v207
        %vm215 = vcmp.le.s32.totalorder %v197, %v207
        %vm216 = vcmp.le.s32.totalorder %v198, %v207
        %vm217 = vcmp.le.s32.totalorder %v199, %v207
        %vm218 = vcmp.le.s32.totalorder %v200, %v207
        %vm219 = vcmp.le.s32.totalorder %v201, %v207
        %vm220 = vcmp.le.s32.totalorder %v202, %v207
        %vm221 = vcmp.le.s32.totalorder %v203, %v207
        %vm222 = vcmp.le.s32.totalorder %v204, %v207
        %vm223 = vcmp.le.s32.totalorder %v205, %v207
        %v224 = vsel %vm208, 1, 0
        %v225 = vsel %vm209, 1, 0
        %v226 = vsel %vm210, 1, 0
        %v227 = vsel %vm211, 1, 0
        %v228 = vsel %vm212, 1, 0
        %v229 = vsel %vm213, 1, 0
        %v230 = vsel %vm214, 1, 0
        %v231 = vsel %vm215, 1, 0
        %v232 = vsel %vm216, 1, 0
        %v233 = vsel %vm217, 1, 0
        %v234 = vsel %vm218, 1, 0
        %v235 = vsel %vm219, 1, 0
        %v236 = vsel %vm220, 1, 0
        %v237 = vsel %vm221, 1, 0
        %v238 = vsel %vm222, 1, 0
        %v239 = vsel %vm223, 1, 0
        %v240 = vcvt.s32.f32 %v224
        %v241 = vcvt.s32.f32 %v225
        %v242 = vcvt.s32.f32 %v226
        %v243 = vcvt.s32.f32 %v227
        %v244 = vcvt.s32.f32 %v228
        %v245 = vcvt.s32.f32 %v229
        %v246 = vcvt.s32.f32 %v230
        %v247 = vcvt.s32.f32 %v231
        %v248 = vcvt.s32.f32 %v232
        %v249 = vcvt.s32.f32 %v233
        %v250 = vcvt.s32.f32 %v234
        %v251 = vcvt.s32.f32 %v235
        %v252 = vcvt.s32.f32 %v236
        %v253 = vcvt.s32.f32 %v237
        %v254 = vcvt.s32.f32 %v238
        %v255 = vcvt.s32.f32 %v239
        %v256 = vpack.c.bf16 %v241, %v240
        %v257 = vpack.c.bf16 %v243, %v242
        %v258 = vpack.c.bf16 %v245, %v244
        %v259 = vpack.c.bf16 %v247, %v246
        %v260 = vpack.c.bf16 %v249, %v248
        %v261 = vpack.c.bf16 %v251, %v250
        %v262 = vpack.c.bf16 %v253, %v252
        %v263 = vpack.c.bf16 %v255, %v254
        %v272 = vunpack.c.l.b16 %v256
        %v273 = vunpack.c.h.b16 %v256
        %v274 = vunpack.c.l.b16 %v257
        %v275 = vunpack.c.h.b16 %v257
        %v276 = vunpack.c.l.b16 %v258
        %v277 = vunpack.c.h.b16 %v258
        %v278 = vunpack.c.l.b16 %v259
        %v279 = vunpack.c.h.b16 %v259
        %v280 = vunpack.c.l.b16 %v260
        %v281 = vunpack.c.h.b16 %v260
        %v282 = vunpack.c.l.b16 %v261
        %v283 = vunpack.c.h.b16 %v261
        %v284 = vunpack.c.l.b16 %v262
        %v285 = vunpack.c.h.b16 %v262
        %v286 = vunpack.c.l.b16 %v263
        %v287 = vunpack.c.h.b16 %v263
        %v288 = vpack.c.b16 %v272, %v272
        %v289 = vpack.c.b16 %v273, %v273
        %v290 = vpack.c.b16 %v274, %v274
        %v291 = vpack.c.b16 %v275, %v275
        %v292 = vpack.c.b16 %v276, %v276
        %v293 = vpack.c.b16 %v277, %v277
        %v294 = vpack.c.b16 %v278, %v278
        %v295 = vpack.c.b16 %v279, %v279
        %v296 = vpack.c.b16 %v280, %v280
        %v297 = vpack.c.b16 %v281, %v281
        %v298 = vpack.c.b16 %v282, %v282
        %v299 = vpack.c.b16 %v283, %v283
        %v300 = vpack.c.b16 %v284, %v284
        %v301 = vpack.c.b16 %v285, %v285
        %v302 = vpack.c.b16 %v286, %v286
        %v303 = vpack.c.b16 %v287, %v287
        %320 = vst [vmem:[#allocation2] sm:$0xf] %v288
        %321 = vst [vmem:[#allocation2 + $0x4] sm:$0xf] %v289
        %322 = vst [vmem:[#allocation2 + $0x8] sm:$0xf] %v290
        %323 = vst [vmem:[#allocation2 + $0xc] sm:$0xf] %v291
        %324 = vst [vmem:[#allocation2 + $0x10] sm:$0xf] %v292
        %325 = vst [vmem:[#allocation2 + $0x14] sm:$0xf] %v293
        %326 = vst [vmem:[#allocation2 + $0x18] sm:$0xf] %v294
        %327 = vst [vmem:[#allocation2 + $0x1c] sm:$0xf] %v295
        %328 = vst [vmem:[#allocation2 + $0x20] sm:$0xf] %v296
        %329 = vst [vmem:[#allocation2 + $0x24] sm:$0xf] %v297
        %330 = vst [vmem:[#allocation2 + $0x28] sm:$0xf] %v298
        %331 = vst [vmem:[#allocation2 + $0x2c] sm:$0xf] %v299
        %332 = vst [vmem:[#allocation2 + $0x30] sm:$0xf] %v300
        %333 = vst [vmem:[#allocation2 + $0x34] sm:$0xf] %v301
        %334 = vst [vmem:[#allocation2 + $0x38] sm:$0xf] %v302
        %335 = vst [vmem:[#allocation2 + $0x3c] sm:$0xf] %v303
      $region36: #{_lambda_.1} parent=31 // pred_fallthru
        _
      %v336 = vld [vmem:[%s0] sm:$0xf]
      %v337 = vld [vmem:[#allocation2] sm:$0xf]
      %v338 = vld [vmem:[#allocation2 + $0x4] sm:$0xf]
      %v339 = vld [vmem:[#allocation2 + $0x8] sm:$0xf]
      %v340 = vld [vmem:[#allocation2 + $0xc] sm:$0xf]
      %v341 = vld [vmem:[#allocation2 + $0x10] sm:$0xf]
      %v342 = vld [vmem:[#allocation2 + $0x14] sm:$0xf]
      %v343 = vld [vmem:[#allocation2 + $0x18] sm:$0xf]
      %v344 = vld [vmem:[#allocation2 + $0x1c] sm:$0xf]
      %v345 = vld [vmem:[#allocation2 + $0x20] sm:$0xf]
      %v346 = vld [vmem:[#allocation2 + $0x24] sm:$0xf]
      %v347 = vld [vmem:[#allocation2 + $0x28] sm:$0xf]
      %v348 = vld [vmem:[#allocation2 + $0x2c] sm:$0xf]
      %v349 = vld [vmem:[#allocation2 + $0x30] sm:$0xf]
      %v350 = vld [vmem:[#allocation2 + $0x34] sm:$0xf]
      %v351 = vld [vmem:[#allocation2 + $0x38] sm:$0xf]
      %v352 = vld [vmem:[#allocation2 + $0x3c] sm:$0xf]
      %v353 = vlaneseq
      %v354 = vand.u32 %v353, 127
      %v355 = vcvt.s32.f32 %v354
      %v356 = vadd.f32 %v355, 1.0
      %vm357 = vcmp.eq.s32.totalorder %v354, 0
      %v358 = vld [vmem:[#allocation3] sm:$0xf]
      %v359 = vld [vmem:[#allocation4] sm:$0xf]
      %v360 = vld [vmem:[#allocation5] sm:$0xf]
      %s361 = smul.u32 %s14, 256
      %s362 = scvt.s32.f32 %s361
      %v363 = vld [vmem:[%s172] sm:$0xf]
      %v364 = vld [vmem:[%s178] sm:$0x3]
      %366 = vset.pattern.permute.xlu0 0
      %367 = vperm.xlu0 %366, %v358
      %v368 = vpop.permute.xlu0 %367
      %v386 = vunpack.c.l.b16 %v337
      %v387 = vunpack.c.l.b16 %v338
      %v388 = vunpack.c.l.b16 %v339
      %v389 = vunpack.c.l.b16 %v340
      %v390 = vunpack.c.l.b16 %v341
      %v391 = vunpack.c.l.b16 %v342
      %v392 = vunpack.c.l.b16 %v343
      %v393 = vunpack.c.l.b16 %v344
      %v394 = vunpack.c.l.b16 %v345
      %v395 = vunpack.c.l.b16 %v346
      %v396 = vunpack.c.l.b16 %v347
      %v397 = vunpack.c.l.b16 %v348
      %v398 = vunpack.c.l.b16 %v349
      %v399 = vunpack.c.l.b16 %v350
      %v400 = vunpack.c.l.b16 %v351
      %v401 = vunpack.c.l.b16 %v352
      %v402 = vpack.c.b16 %v387, %v386
      %v403 = vpack.c.b16 %v389, %v388
      %v404 = vpack.c.b16 %v391, %v390
      %v405 = vpack.c.b16 %v393, %v392
      %v406 = vpack.c.b16 %v395, %v394
      %v407 = vpack.c.b16 %v397, %v396
      %v408 = vpack.c.b16 %v399, %v398
      %v409 = vpack.c.b16 %v401, %v400
      %418 = vmatprep.subr.bf16.mxu0 0
      %419 = vmatpush1.bf16.msra.mxu0 %v409
      %420 = vmatprep.subr.bf16.mxu0 0
      %421 = vmatpush1.bf16.msra.mxu0 %v408
      %422 = vmatprep.subr.bf16.mxu0 0
      %423 = vmatpush1.bf16.msra.mxu0 %v407
      %424 = vmatprep.subr.bf16.mxu0 0
      %425 = vmatpush1.bf16.msra.mxu0 %v406
      %426 = vmatprep.subr.bf16.mxu0 0
      %427 = vmatpush1.bf16.msra.mxu0 %v405
      %428 = vmatprep.subr.bf16.mxu0 0
      %429 = vmatpush1.bf16.msra.mxu0 %v404
      %430 = vmatprep.subr.bf16.mxu0 0
      %431 = vmatpush1.bf16.msra.mxu0 %v403
      %432 = vmatprep.subr.bf16.mxu0 0
      %433 = vmatpush1.bf16.msra.mxu0 %v402
      %434 = vmatprep.subr.bf16.mxu0 0
      %435 = vmatpush2.bf16.msra.mxu0 0
      %436 = vmatprep.subr.bf16.mxu0 0
      %437 = vmatpush2.bf16.msra.mxu0 0
      %438 = vmatprep.subr.bf16.mxu0 0
      %439 = vmatpush2.bf16.msra.mxu0 0
      %440 = vmatprep.subr.bf16.mxu0 0
      %441 = vmatpush2.bf16.msra.mxu0 0
      %442 = vmatprep.subr.bf16.mxu0 0
      %443 = vmatpush2.bf16.msra.mxu0 0
      %444 = vmatprep.subr.bf16.mxu0 0
      %445 = vmatpush2.bf16.msra.mxu0 0
      %446 = vmatprep.subr.bf16.mxu0 0
      %447 = vmatpush2.bf16.msra.mxu0 0
      %448 = vmatprep.subr.bf16.mxu0 0
      %449 = vmatpush2.bf16.msra.mxu0 0
      %450 = vmatprep.mubr.bf16.mxu0 0
      %451 = vmatmul.mubr.bf16.gmra.mxu0 %v364
      %v452 = vpop.f32.mrf.mxu0
      %v453 = vadd.f32 %v368, %v452
      %v454 = vpop.f32.mrf.mxu0
      %v455 = vpop.f32.mrf.mxu0
      %v456 = vpop.f32.mrf.mxu0
      %457 = vdwg.mxu0
      %s458 = sadd.f32 %s362, 0.0
      %v459 = vstv %s458
      %v460 = vadd.f32 %v356, %v459
      %v461 = vsub.f32 %v460, %v453
      %463 = vset.pattern.permute.xlu0 0
      %464 = vperm.xlu0 %463, %v336
      %v465 = vpop.permute.xlu0 %464
      %v467 = vsub.f32 %v465, %v453
      %v468 = vadd.f32 %v465, %v461
      %v469 = vrcp.pop %v468
      %v470 = vmul.f32 %v467, %v469
      %v471 = vsub.f32 1.0, %v470
      %472 = vrot.lane.b32.xlu0 %v471, 1
      %v473 = vpop.permute.xlu0 %472
      %475 = vset.pattern.permute.xlu0 0
      %476 = vperm.xlu0 %475, %v359
      %v477 = vpop.permute.xlu0 %476
      %v479 = vsel %vm357, %v477, %v473
      %v480 = vsub.f32 %v471, %v479
      %v481 = vmul.f32 %v363, %v480
      %vm482 = vcmask 1043456
      %v483 = vsel %vm482, %v481, 0.0
      %484 = vadd.xlane.f32.xlu0 %v483
      %v485 = vpop.xlane.xlu0 %484
      %v486 = vadd.f32 %v360, %v485
      %v487 = vld [vmem:[%s172 + $0x4] sm:$0xf]
      %v488 = vld [vmem:[%s178 + $0x2] sm:$0x3]
      %490 = vset.pattern.permute.xlu0 127
      %491 = vperm.xlu0 %490, %v453
      %v492 = vpop.permute.xlu0 %491
      %494 = vmatprep.subr.bf16.mxu0 0
      %495 = vmatpush1.bf16.msra.mxu0 %v409
      %496 = vmatprep.subr.bf16.mxu0 0
      %497 = vmatpush1.bf16.msra.mxu0 %v408
      %498 = vmatprep.subr.bf16.mxu0 0
      %499 = vmatpush1.bf16.msra.mxu0 %v407
      %500 = vmatprep.subr.bf16.mxu0 0
      %501 = vmatpush1.bf16.msra.mxu0 %v406
      %502 = vmatprep.subr.bf16.mxu0 0
      %503 = vmatpush1.bf16.msra.mxu0 %v405
      %504 = vmatprep.subr.bf16.mxu0 0
      %505 = vmatpush1.bf16.msra.mxu0 %v404
      %506 = vmatprep.subr.bf16.mxu0 0
      %507 = vmatpush1.bf16.msra.mxu0 %v403
      %508 = vmatprep.subr.bf16.mxu0 0
      %509 = vmatpush1.bf16.msra.mxu0 %v402
      %510 = vmatprep.subr.bf16.mxu0 0
      %511 = vmatpush2.bf16.msra.mxu0 0
      %512 = vmatprep.subr.bf16.mxu0 0
      %513 = vmatpush2.bf16.msra.mxu0 0
      %514 = vmatprep.subr.bf16.mxu0 0
      %515 = vmatpush2.bf16.msra.mxu0 0
      %516 = vmatprep.subr.bf16.mxu0 0
      %517 = vmatpush2.bf16.msra.mxu0 0
      %518 = vmatprep.subr.bf16.mxu0 0
      %519 = vmatpush2.bf16.msra.mxu0 0
      %520 = vmatprep.subr.bf16.mxu0 0
      %521 = vmatpush2.bf16.msra.mxu0 0
      %522 = vmatprep.subr.bf16.mxu0 0
      %523 = vmatpush2.bf16.msra.mxu0 0
      %524 = vmatprep.subr.bf16.mxu0 0
      %525 = vmatpush2.bf16.msra.mxu0 0
      %526 = vmatprep.mubr.bf16.mxu0 0
      %527 = vmatmul.mubr.bf16.gmra.mxu0 %v488
      %v528 = vpop.f32.mrf.mxu0
      %v529 = vadd.f32 %v492, %v528
      %v530 = vpop.f32.mrf.mxu0
      %v531 = vpop.f32.mrf.mxu0
      %v532 = vpop.f32.mrf.mxu0
      %533 = vdwg.mxu0
      %s534 = sadd.f32 %s362, 128.0
      %v535 = vstv %s534
      %v536 = vadd.f32 %v356, %v535
      %v537 = vsub.f32 %v536, %v529
      %v538 = vsub.f32 %v465, %v529
      %v539 = vadd.f32 %v465, %v537
      %v540 = vrcp.pop %v539
      %v541 = vmul.f32 %v538, %v540
      %v542 = vsub.f32 1.0, %v541
      %543 = vrot.lane.b32.xlu0 %v542, 1
      %v544 = vpop.permute.xlu0 %543
      %546 = vset.pattern.permute.xlu0 127
      %547 = vperm.xlu0 %546, %v471
      %v548 = vpop.permute.xlu0 %547
      %v550 = vsel %vm357, %v548, %v544
      %v551 = vsub.f32 %v542, %v550
      %v552 = vmul.f32 %v487, %v551
      %v553 = vsel %vm482, %v552, 0.0
      %554 = vadd.xlane.f32.xlu0 %v553
      %v555 = vpop.xlane.xlu0 %554
      %v556 = vadd.f32 %v486, %v555
      %558 = vrot.lane.b32.xlu0 %v529, 1
      %v559 = vpop.permute.xlu0 %558
      %vm561 = vcmask 3072
      %562 = vst.msk [vmem:[#allocation3] sm:$0xf] %vm561, %v559
      %564 = vrot.lane.b32.xlu0 %v542, 1
      %v565 = vpop.permute.xlu0 %564
      %567 = vst.msk [vmem:[#allocation4] sm:$0xf] %vm561, %v565
      %568 = vst.msk [vmem:[#allocation5] sm:$0xf] %vm561, %v556
      %p569 = scmp.eq.s32.totalorder %s14, 1
      // Predicated region
      $region37: #{_lambda_.1} parent=31 // pred_check
        %p570 = pneg %p569
      $region38: #{_lambda_.1} parent=31 // pred_check_branch
        %572 = sbr.rel (%p570) target = $region40
      $region39: #{_lambda_.1} parent=31 // pred_region
        %573 = vst.msk [vmem:[%s3] sm:$0xf] %vm561, %v556
      $region40: #{_lambda_.1} parent=31 // pred_fallthru
        _
      // Predicated region
      $region41: #{_lambda_.1} parent=31 // pred_check
        %p574 = pneg %p100
      $region42: #{_lambda_.1} parent=31 // pred_check_branch
        %576 = sbr.rel (%p574) target = $region44
      $region43: #{_lambda_.1} parent=31 // pred_region
        _
      $region44: #{_lambda_.1} parent=31 // pred_fallthru
        _
      // Predicated region
      $region45: #{_lambda_.1} parent=31 // pred_check
        %p577 = pneg %p100
      $region46: #{_lambda_.1} parent=31 // pred_check_branch
        %579 = sbr.rel (%p577) target = $region48
      $region47: #{_lambda_.1} parent=31 // pred_region
        _
      $region48: #{_lambda_.1} parent=31 // pred_fallthru
        _
    $region32: #{_lambda_.1} parent=5 // pred_fallthru
      _
    %p580 = scmp.le.s32.totalorder 2, %s9
    // Predicated region
    $region49: #{_lambda_.1} parent=5 // pred_check
      %p581 = pneg %p580
    $region50: #{_lambda_.1} parent=5 // pred_check_branch
      %583 = sbr.rel (%p581) target = $region52
    $region51: #{_lambda_.1} parent=5 // pred_region
      %s584 = ssub.s32 %s9, 2
    $region52: #{_lambda_.1} parent=5 // pred_fallthru
      _
  $region6: #{_lambda_.1} parent=0 // loop_footer
    %s13 = sadd.s32 1, %s9
  $region7: #{_lambda_.1} parent=0 // loop_footer_branch
    %8 = sbr.rel target = $region3
  $region8: #{_lambda_.1} parent=0 // loop_exit
    _

</llo_original>
